<compile_context>
chip_gen: v7x
topology: tpu7x:2x2x1
jax: 0.10.0
libtpu: 0.0.40
codegen_flags: <defaults>
</compile_context>

<pallas_src>
import math

import jax
import jax.numpy as jnp
from jax.experimental import pallas as pl
from jax.experimental.pallas import tpu as pltpu


def _fma_layer(h, w_t, b):
    """y = W @ h + b with h: (in, TM), w_t: (out, in), b: (out, 1) -> (out, TM).

    Statically unrolled broadcast-FMA over the tiny `in` dim keeps the work on the
    VPU; the bias broadcast seeds the accumulator (one broadcast per layer).
    """
    out_f, in_f = w_t.shape
    tm = h.shape[-1]
    acc = jnp.broadcast_to(b, (out_f, tm))
    for i in range(in_f):                         # static unroll (3 or 10 steps)
        acc = acc + w_t[:, i:i + 1] * h[i:i + 1, :]
    return acc


def _mlp_kernel(x_ref, w1_ref, b1_ref, w2_ref, b2_ref, w3_ref, b3_ref, o_ref):
    # x_ref: (3, TM) f32, w*_ref: (out, in), b*_ref: (out, 1), o_ref: (3, TM)
    x = x_ref[...]
    z = jnp.tanh(_fma_layer(x, w1_ref[...], b1_ref[...]))
    z = jnp.tanh(_fma_layer(z, w2_ref[...], b2_ref[...]))
    z = _fma_layer(z, w3_ref[...], b3_ref[...])
    o_ref[...] = jnp.abs(z)


def _round_up(n, m):
    return ((n + m - 1) // m) * m


def net_forward_pallas(x, params, block_b=8192):
    """Tiled Pallas forward pass. x: (B, 3) f32 -> (B, 3) f32."""
    if block_b % 128 != 0:
        raise ValueError("block_b must be a multiple of 128 (lane width)")
    w1, b1, w2, b2, w3, b3 = params
    B = x.shape[0]

    # Transposed (out, in) weights / (out, 1) biases so the batch-on-lanes kernel
    # slices weight columns without any in-kernel relayout.
    w1_t, w2_t, w3_t = w1.T, w2.T, w3.T
    b1_c, b2_c, b3_c = (b.reshape(-1, 1) for b in (b1, b2, b3))

    tm = min(block_b, _round_up(B, 128))          # lane-tile size (multiple of 128)
    b_pad = _round_up(B, tm)
    grid = (b_pad // tm,)

    # (B, 3) -> (3, B_pad) with batch on lanes.  One transpose copy; the zero-pad is
    # fused into it and skipped entirely when B is already tile-aligned.
    x_t = x.astype(jnp.float32).T
    if b_pad != B:
        x_t = jnp.pad(x_t, ((0, 0), (0, b_pad - B)))

    full = lambda a: pl.BlockSpec(a.shape, lambda i: (0, 0))  # resident weight block

    out_t = pl.pallas_call(
        _mlp_kernel,
        out_shape=jax.ShapeDtypeStruct((3, b_pad), jnp.float32),
        grid_spec=pltpu.PrefetchScalarGridSpec(
            num_scalar_prefetch=0,
            grid=grid,
            in_specs=[
                pl.BlockSpec((3, tm), lambda i: (0, i)),   # x tile: lane-dense
                full(w1_t), full(b1_c),
                full(w2_t), full(b2_c),
                full(w3_t), full(b3_c),
            ],
            out_specs=pl.BlockSpec((3, tm), lambda i: (0, i)),  # lane-dense stores
        ),
        compiler_params=pltpu.CompilerParams(
            dimension_semantics=("parallel",),      # v7x: shard batch tiles across 2 TCs
            vmem_limit_bytes=32 * 1024 * 1024,      # tiles ~100 KiB; safe on v7x's 64 MiB VMEM
        ),
    )(x_t, w1_t, b1_c, w2_t, b2_c, w3_t, b3_c)

    if b_pad != B:
        out_t = out_t[:, :B]
    return out_t.T


def net_forward_ref(x, params):
    """Pure-JAX reference (also the small-batch fast path)."""
    w1, b1, w2, b2, w3, b3 = params
    z = jnp.tanh(x @ w1 + b1)
    z = jnp.tanh(z @ w2 + b2)
    return jnp.abs(z @ w3 + b3)


def net_forward(x, params, block_b=8192, min_pallas_batch=1024):
    """Dispatch: a 3->10->10->3 MLP at tiny batch is pure launch/DMA overhead for a
    custom kernel, so route small batches to XLA; large batches use the tiled kernel."""
    if x.shape[0] < min_pallas_batch:
        return net_forward_ref(x, params)
    return net_forward_pallas(x, params, block_b=block_b)


def init_params(key):
    """Shapes/init matching the PyTorch module: hid1/hid2 weights xavier_uniform,
    oupt weight and all biases PyTorch-Linear default uniform(-1/sqrt(fan_in), ...).
    Weights stored as (in, out) so the reference computes x @ W + b."""
    k1, k2, k3, kb1, kb2, kb3 = jax.random.split(key, 6)

    def xavier(k, fan_in, fan_out):
        bound = math.sqrt(6.0 / (fan_in + fan_out))
        return jax.random.uniform(k, (fan_in, fan_out), jnp.float32, -bound, bound)

    def default_w(k, fan_in, fan_out):
        bound = 1.0 / math.sqrt(fan_in)
        return jax.random.uniform(k, (fan_in, fan_out), jnp.float32, -bound, bound)

    def default_b(k, fan_in, fan_out):
        bound = 1.0 / math.sqrt(fan_in)
        return jax.random.uniform(k, (1, fan_out), jnp.float32, -bound, bound)

    w1 = xavier(k1, 3, 10)
    b1 = default_b(kb1, 3, 10)
    w2 = xavier(k2, 10, 10)
    b2 = default_b(kb2, 10, 10)
    w3 = default_w(k3, 10, 3)
    b3 = default_b(kb3, 10, 3)
    return (w1, b1, w2, b2, w3, b3)


if __name__ == "__main__":
    key = jax.random.PRNGKey(0)
    kp, kx = jax.random.split(key)
    params = init_params(kp)

    # Multi-tile Pallas test at a small shape: B=1000 pads to 1024, grid=(4,) of 256-lane tiles.
    B = 1000
    x = jax.random.normal(kx, (B, 3), jnp.float32)
    out = jax.block_until_ready(net_forward_pallas(x, params, block_b=256))
    ref = net_forward_ref(x, params)
    assert out.shape == (B, 3)
    assert jnp.allclose(out, ref, atol=1e-5, rtol=1e-5), "Pallas kernel mismatch vs JAX reference"

    # Tile-aligned case (no pad / no slice on the wrapper path).
    x_al = jax.random.normal(jax.random.PRNGKey(2), (512, 3), jnp.float32)
    out_al = jax.block_until_ready(net_forward_pallas(x_al, params, block_b=256))
    assert jnp.allclose(out_al, net_forward_ref(x_al, params), atol=1e-5, rtol=1e-5)

    # Small-batch dispatch path (bypasses Pallas: launch overhead > work at B=8).
    x_small = jax.random.normal(jax.random.PRNGKey(1), (8, 3), jnp.float32)
    out_small = jax.block_until_ready(net_forward(x_small, params))
    assert jnp.allclose(out_small, net_forward_ref(x_small, params), atol=1e-5, rtol=1e-5)

    print("KERNEL_OK")
</pallas_src>

<mosaic_0001>
module attributes {stable_mosaic.version = 11 : i64} {
  func.func @_mlp_kernel(%arg0: i32, %arg1: memref<3x256xf32, #tpu.memory_space<vmem>>, %arg2: memref<10x3xf32, #tpu.memory_space<vmem>>, %arg3: memref<10x1xf32, #tpu.memory_space<vmem>>, %arg4: memref<10x10xf32, #tpu.memory_space<vmem>>, %arg5: memref<10x1xf32, #tpu.memory_space<vmem>>, %arg6: memref<3x10xf32, #tpu.memory_space<vmem>>, %arg7: memref<3x1xf32, #tpu.memory_space<vmem>>, %arg8: memref<3x256xf32, #tpu.memory_space<vmem>>) attributes {dimension_semantics = [#tpu.dimension_semantics<parallel>], iteration_bounds = array<i64: 4>, scalar_prefetch = 0 : i64, scratch_operands = 0 : i64, tpu.core_type = #tpu.core_type<tc>, window_params = [{transform_indices = @transform_0, window_bounds = array<i64: 3, 256>}, {pipeline_mode = #tpu.pipeline_mode<synchronous>, transform_indices = @transform_1, window_bounds = array<i64: 10, 3>}, {pipeline_mode = #tpu.pipeline_mode<synchronous>, transform_indices = @transform_2, window_bounds = array<i64: 10, 1>}, {pipeline_mode = #tpu.pipeline_mode<synchronous>, transform_indices = @transform_3, window_bounds = array<i64: 10, 10>}, {pipeline_mode = #tpu.pipeline_mode<synchronous>, transform_indices = @transform_4, window_bounds = array<i64: 10, 1>}, {pipeline_mode = #tpu.pipeline_mode<synchronous>, transform_indices = @transform_5, window_bounds = array<i64: 3, 10>}, {pipeline_mode = #tpu.pipeline_mode<synchronous>, transform_indices = @transform_6, window_bounds = array<i64: 3, 1>}, {transform_indices = @transform_7, window_bounds = array<i64: 3, 256>}]} {
    %c0 = arith.constant 0 : index
    %c0_0 = arith.constant 0 : index
    %0 = vector.load %arg1[%c0, %c0_0] : memref<3x256xf32, #tpu.memory_space<vmem>>, vector<3x256xf32>
    %c0_1 = arith.constant 0 : index
    %c0_2 = arith.constant 0 : index
    %1 = vector.load %arg2[%c0_1, %c0_2] : memref<10x3xf32, #tpu.memory_space<vmem>>, vector<10x3xf32>
    %c0_3 = arith.constant 0 : index
    %c0_4 = arith.constant 0 : index
    %2 = vector.load %arg3[%c0_3, %c0_4] : memref<10x1xf32, #tpu.memory_space<vmem>>, vector<10x1xf32>
    %3 = vector.shape_cast %2 : vector<10x1xf32> to vector<10x1xf32>
    %4 = vector.broadcast %3 : vector<10x1xf32> to vector<10x256xf32>
    %5 = vector.extract_strided_slice %1 {offsets = [0, 0], sizes = [10, 1], strides = [1, 1]} : vector<10x3xf32> to vector<10x1xf32>
    %6 = vector.extract_strided_slice %0 {offsets = [0, 0], sizes = [1, 256], strides = [1, 1]} : vector<3x256xf32> to vector<1x256xf32>
    %7 = vector.broadcast %5 : vector<10x1xf32> to vector<10x256xf32>
    %8 = vector.broadcast %6 : vector<1x256xf32> to vector<10x256xf32>
    %9 = arith.mulf %7, %8 : vector<10x256xf32>
    %10 = arith.addf %4, %9 : vector<10x256xf32>
    %11 = vector.extract_strided_slice %1 {offsets = [0, 1], sizes = [10, 1], strides = [1, 1]} : vector<10x3xf32> to vector<10x1xf32>
    %12 = vector.extract_strided_slice %0 {offsets = [1, 0], sizes = [1, 256], strides = [1, 1]} : vector<3x256xf32> to vector<1x256xf32>
    %13 = vector.broadcast %11 : vector<10x1xf32> to vector<10x256xf32>
    %14 = vector.broadcast %12 : vector<1x256xf32> to vector<10x256xf32>
    %15 = arith.mulf %13, %14 : vector<10x256xf32>
    %16 = arith.addf %10, %15 : vector<10x256xf32>
    %17 = vector.extract_strided_slice %1 {offsets = [0, 2], sizes = [10, 1], strides = [1, 1]} : vector<10x3xf32> to vector<10x1xf32>
    %18 = vector.extract_strided_slice %0 {offsets = [2, 0], sizes = [1, 256], strides = [1, 1]} : vector<3x256xf32> to vector<1x256xf32>
    %19 = vector.broadcast %17 : vector<10x1xf32> to vector<10x256xf32>
    %20 = vector.broadcast %18 : vector<1x256xf32> to vector<10x256xf32>
    %21 = arith.mulf %19, %20 : vector<10x256xf32>
    %22 = arith.addf %16, %21 : vector<10x256xf32>
    %23 = math.tanh %22 : vector<10x256xf32>
    %c0_5 = arith.constant 0 : index
    %c0_6 = arith.constant 0 : index
    %24 = vector.load %arg4[%c0_5, %c0_6] : memref<10x10xf32, #tpu.memory_space<vmem>>, vector<10x10xf32>
    %c0_7 = arith.constant 0 : index
    %c0_8 = arith.constant 0 : index
    %25 = vector.load %arg5[%c0_7, %c0_8] : memref<10x1xf32, #tpu.memory_space<vmem>>, vector<10x1xf32>
    %26 = vector.shape_cast %25 : vector<10x1xf32> to vector<10x1xf32>
    %27 = vector.broadcast %26 : vector<10x1xf32> to vector<10x256xf32>
    %28 = vector.extract_strided_slice %24 {offsets = [0, 0], sizes = [10, 1], strides = [1, 1]} : vector<10x10xf32> to vector<10x1xf32>
    %29 = vector.extract_strided_slice %23 {offsets = [0, 0], sizes = [1, 256], strides = [1, 1]} : vector<10x256xf32> to vector<1x256xf32>
    %30 = vector.broadcast %28 : vector<10x1xf32> to vector<10x256xf32>
    %31 = vector.broadcast %29 : vector<1x256xf32> to vector<10x256xf32>
    %32 = arith.mulf %30, %31 : vector<10x256xf32>
    %33 = arith.addf %27, %32 : vector<10x256xf32>
    %34 = vector.extract_strided_slice %24 {offsets = [0, 1], sizes = [10, 1], strides = [1, 1]} : vector<10x10xf32> to vector<10x1xf32>
    %35 = vector.extract_strided_slice %23 {offsets = [1, 0], sizes = [1, 256], strides = [1, 1]} : vector<10x256xf32> to vector<1x256xf32>
    %36 = vector.broadcast %34 : vector<10x1xf32> to vector<10x256xf32>
    %37 = vector.broadcast %35 : vector<1x256xf32> to vector<10x256xf32>
    %38 = arith.mulf %36, %37 : vector<10x256xf32>
    %39 = arith.addf %33, %38 : vector<10x256xf32>
    %40 = vector.extract_strided_slice %24 {offsets = [0, 2], sizes = [10, 1], strides = [1, 1]} : vector<10x10xf32> to vector<10x1xf32>
    %41 = vector.extract_strided_slice %23 {offsets = [2, 0], sizes = [1, 256], strides = [1, 1]} : vector<10x256xf32> to vector<1x256xf32>
    %42 = vector.broadcast %40 : vector<10x1xf32> to vector<10x256xf32>
    %43 = vector.broadcast %41 : vector<1x256xf32> to vector<10x256xf32>
    %44 = arith.mulf %42, %43 : vector<10x256xf32>
    %45 = arith.addf %39, %44 : vector<10x256xf32>
    %46 = vector.extract_strided_slice %24 {offsets = [0, 3], sizes = [10, 1], strides = [1, 1]} : vector<10x10xf32> to vector<10x1xf32>
    %47 = vector.extract_strided_slice %23 {offsets = [3, 0], sizes = [1, 256], strides = [1, 1]} : vector<10x256xf32> to vector<1x256xf32>
    %48 = vector.broadcast %46 : vector<10x1xf32> to vector<10x256xf32>
    %49 = vector.broadcast %47 : vector<1x256xf32> to vector<10x256xf32>
    %50 = arith.mulf %48, %49 : vector<10x256xf32>
    %51 = arith.addf %45, %50 : vector<10x256xf32>
    %52 = vector.extract_strided_slice %24 {offsets = [0, 4], sizes = [10, 1], strides = [1, 1]} : vector<10x10xf32> to vector<10x1xf32>
    %53 = vector.extract_strided_slice %23 {offsets = [4, 0], sizes = [1, 256], strides = [1, 1]} : vector<10x256xf32> to vector<1x256xf32>
    %54 = vector.broadcast %52 : vector<10x1xf32> to vector<10x256xf32>
    %55 = vector.broadcast %53 : vector<1x256xf32> to vector<10x256xf32>
    %56 = arith.mulf %54, %55 : vector<10x256xf32>
    %57 = arith.addf %51, %56 : vector<10x256xf32>
    %58 = vector.extract_strided_slice %24 {offsets = [0, 5], sizes = [10, 1], strides = [1, 1]} : vector<10x10xf32> to vector<10x1xf32>
    %59 = vector.extract_strided_slice %23 {offsets = [5, 0], sizes = [1, 256], strides = [1, 1]} : vector<10x256xf32> to vector<1x256xf32>
    %60 = vector.broadcast %58 : vector<10x1xf32> to vector<10x256xf32>
    %61 = vector.broadcast %59 : vector<1x256xf32> to vector<10x256xf32>
    %62 = arith.mulf %60, %61 : vector<10x256xf32>
    %63 = arith.addf %57, %62 : vector<10x256xf32>
    %64 = vector.extract_strided_slice %24 {offsets = [0, 6], sizes = [10, 1], strides = [1, 1]} : vector<10x10xf32> to vector<10x1xf32>
    %65 = vector.extract_strided_slice %23 {offsets = [6, 0], sizes = [1, 256], strides = [1, 1]} : vector<10x256xf32> to vector<1x256xf32>
    %66 = vector.broadcast %64 : vector<10x1xf32> to vector<10x256xf32>
    %67 = vector.broadcast %65 : vector<1x256xf32> to vector<10x256xf32>
    %68 = arith.mulf %66, %67 : vector<10x256xf32>
    %69 = arith.addf %63, %68 : vector<10x256xf32>
    %70 = vector.extract_strided_slice %24 {offsets = [0, 7], sizes = [10, 1], strides = [1, 1]} : vector<10x10xf32> to vector<10x1xf32>
    %71 = vector.extract_strided_slice %23 {offsets = [7, 0], sizes = [1, 256], strides = [1, 1]} : vector<10x256xf32> to vector<1x256xf32>
    %72 = vector.broadcast %70 : vector<10x1xf32> to vector<10x256xf32>
    %73 = vector.broadcast %71 : vector<1x256xf32> to vector<10x256xf32>
    %74 = arith.mulf %72, %73 : vector<10x256xf32>
    %75 = arith.addf %69, %74 : vector<10x256xf32>
    %76 = vector.extract_strided_slice %24 {offsets = [0, 8], sizes = [10, 1], strides = [1, 1]} : vector<10x10xf32> to vector<10x1xf32>
    %77 = vector.extract_strided_slice %23 {offsets = [8, 0], sizes = [1, 256], strides = [1, 1]} : vector<10x256xf32> to vector<1x256xf32>
    %78 = vector.broadcast %76 : vector<10x1xf32> to vector<10x256xf32>
    %79 = vector.broadcast %77 : vector<1x256xf32> to vector<10x256xf32>
    %80 = arith.mulf %78, %79 : vector<10x256xf32>
    %81 = arith.addf %75, %80 : vector<10x256xf32>
    %82 = vector.extract_strided_slice %24 {offsets = [0, 9], sizes = [10, 1], strides = [1, 1]} : vector<10x10xf32> to vector<10x1xf32>
    %83 = vector.extract_strided_slice %23 {offsets = [9, 0], sizes = [1, 256], strides = [1, 1]} : vector<10x256xf32> to vector<1x256xf32>
    %84 = vector.broadcast %82 : vector<10x1xf32> to vector<10x256xf32>
    %85 = vector.broadcast %83 : vector<1x256xf32> to vector<10x256xf32>
    %86 = arith.mulf %84, %85 : vector<10x256xf32>
    %87 = arith.addf %81, %86 : vector<10x256xf32>
    %88 = math.tanh %87 : vector<10x256xf32>
    %c0_9 = arith.constant 0 : index
    %c0_10 = arith.constant 0 : index
    %89 = vector.load %arg6[%c0_9, %c0_10] : memref<3x10xf32, #tpu.memory_space<vmem>>, vector<3x10xf32>
    %c0_11 = arith.constant 0 : index
    %c0_12 = arith.constant 0 : index
    %90 = vector.load %arg7[%c0_11, %c0_12] : memref<3x1xf32, #tpu.memory_space<vmem>>, vector<3x1xf32>
    %91 = vector.shape_cast %90 : vector<3x1xf32> to vector<3x1xf32>
    %92 = vector.broadcast %91 : vector<3x1xf32> to vector<3x256xf32>
    %93 = vector.extract_strided_slice %89 {offsets = [0, 0], sizes = [3, 1], strides = [1, 1]} : vector<3x10xf32> to vector<3x1xf32>
    %94 = vector.extract_strided_slice %88 {offsets = [0, 0], sizes = [1, 256], strides = [1, 1]} : vector<10x256xf32> to vector<1x256xf32>
    %95 = vector.broadcast %93 : vector<3x1xf32> to vector<3x256xf32>
    %96 = vector.broadcast %94 : vector<1x256xf32> to vector<3x256xf32>
    %97 = arith.mulf %95, %96 : vector<3x256xf32>
    %98 = arith.addf %92, %97 : vector<3x256xf32>
    %99 = vector.extract_strided_slice %89 {offsets = [0, 1], sizes = [3, 1], strides = [1, 1]} : vector<3x10xf32> to vector<3x1xf32>
    %100 = vector.extract_strided_slice %88 {offsets = [1, 0], sizes = [1, 256], strides = [1, 1]} : vector<10x256xf32> to vector<1x256xf32>
    %101 = vector.broadcast %99 : vector<3x1xf32> to vector<3x256xf32>
    %102 = vector.broadcast %100 : vector<1x256xf32> to vector<3x256xf32>
    %103 = arith.mulf %101, %102 : vector<3x256xf32>
    %104 = arith.addf %98, %103 : vector<3x256xf32>
    %105 = vector.extract_strided_slice %89 {offsets = [0, 2], sizes = [3, 1], strides = [1, 1]} : vector<3x10xf32> to vector<3x1xf32>
    %106 = vector.extract_strided_slice %88 {offsets = [2, 0], sizes = [1, 256], strides = [1, 1]} : vector<10x256xf32> to vector<1x256xf32>
    %107 = vector.broadcast %105 : vector<3x1xf32> to vector<3x256xf32>
    %108 = vector.broadcast %106 : vector<1x256xf32> to vector<3x256xf32>
    %109 = arith.mulf %107, %108 : vector<3x256xf32>
    %110 = arith.addf %104, %109 : vector<3x256xf32>
    %111 = vector.extract_strided_slice %89 {offsets = [0, 3], sizes = [3, 1], strides = [1, 1]} : vector<3x10xf32> to vector<3x1xf32>
    %112 = vector.extract_strided_slice %88 {offsets = [3, 0], sizes = [1, 256], strides = [1, 1]} : vector<10x256xf32> to vector<1x256xf32>
    %113 = vector.broadcast %111 : vector<3x1xf32> to vector<3x256xf32>
    %114 = vector.broadcast %112 : vector<1x256xf32> to vector<3x256xf32>
    %115 = arith.mulf %113, %114 : vector<3x256xf32>
    %116 = arith.addf %110, %115 : vector<3x256xf32>
    %117 = vector.extract_strided_slice %89 {offsets = [0, 4], sizes = [3, 1], strides = [1, 1]} : vector<3x10xf32> to vector<3x1xf32>
    %118 = vector.extract_strided_slice %88 {offsets = [4, 0], sizes = [1, 256], strides = [1, 1]} : vector<10x256xf32> to vector<1x256xf32>
    %119 = vector.broadcast %117 : vector<3x1xf32> to vector<3x256xf32>
    %120 = vector.broadcast %118 : vector<1x256xf32> to vector<3x256xf32>
    %121 = arith.mulf %119, %120 : vector<3x256xf32>
    %122 = arith.addf %116, %121 : vector<3x256xf32>
    %123 = vector.extract_strided_slice %89 {offsets = [0, 5], sizes = [3, 1], strides = [1, 1]} : vector<3x10xf32> to vector<3x1xf32>
    %124 = vector.extract_strided_slice %88 {offsets = [5, 0], sizes = [1, 256], strides = [1, 1]} : vector<10x256xf32> to vector<1x256xf32>
    %125 = vector.broadcast %123 : vector<3x1xf32> to vector<3x256xf32>
    %126 = vector.broadcast %124 : vector<1x256xf32> to vector<3x256xf32>
    %127 = arith.mulf %125, %126 : vector<3x256xf32>
    %128 = arith.addf %122, %127 : vector<3x256xf32>
    %129 = vector.extract_strided_slice %89 {offsets = [0, 6], sizes = [3, 1], strides = [1, 1]} : vector<3x10xf32> to vector<3x1xf32>
    %130 = vector.extract_strided_slice %88 {offsets = [6, 0], sizes = [1, 256], strides = [1, 1]} : vector<10x256xf32> to vector<1x256xf32>
    %131 = vector.broadcast %129 : vector<3x1xf32> to vector<3x256xf32>
    %132 = vector.broadcast %130 : vector<1x256xf32> to vector<3x256xf32>
    %133 = arith.mulf %131, %132 : vector<3x256xf32>
    %134 = arith.addf %128, %133 : vector<3x256xf32>
    %135 = vector.extract_strided_slice %89 {offsets = [0, 7], sizes = [3, 1], strides = [1, 1]} : vector<3x10xf32> to vector<3x1xf32>
    %136 = vector.extract_strided_slice %88 {offsets = [7, 0], sizes = [1, 256], strides = [1, 1]} : vector<10x256xf32> to vector<1x256xf32>
    %137 = vector.broadcast %135 : vector<3x1xf32> to vector<3x256xf32>
    %138 = vector.broadcast %136 : vector<1x256xf32> to vector<3x256xf32>
    %139 = arith.mulf %137, %138 : vector<3x256xf32>
    %140 = arith.addf %134, %139 : vector<3x256xf32>
    %141 = vector.extract_strided_slice %89 {offsets = [0, 8], sizes = [3, 1], strides = [1, 1]} : vector<3x10xf32> to vector<3x1xf32>
    %142 = vector.extract_strided_slice %88 {offsets = [8, 0], sizes = [1, 256], strides = [1, 1]} : vector<10x256xf32> to vector<1x256xf32>
    %143 = vector.broadcast %141 : vector<3x1xf32> to vector<3x256xf32>
    %144 = vector.broadcast %142 : vector<1x256xf32> to vector<3x256xf32>
    %145 = arith.mulf %143, %144 : vector<3x256xf32>
    %146 = arith.addf %140, %145 : vector<3x256xf32>
    %147 = vector.extract_strided_slice %89 {offsets = [0, 9], sizes = [3, 1], strides = [1, 1]} : vector<3x10xf32> to vector<3x1xf32>
    %148 = vector.extract_strided_slice %88 {offsets = [9, 0], sizes = [1, 256], strides = [1, 1]} : vector<10x256xf32> to vector<1x256xf32>
    %149 = vector.broadcast %147 : vector<3x1xf32> to vector<3x256xf32>
    %150 = vector.broadcast %148 : vector<1x256xf32> to vector<3x256xf32>
    %151 = arith.mulf %149, %150 : vector<3x256xf32>
    %152 = arith.addf %146, %151 : vector<3x256xf32>
    %153 = math.absf %152 : vector<3x256xf32>
    %c0_13 = arith.constant 0 : index
    %c0_14 = arith.constant 0 : index
    %154 = vector.load %arg8[%c0_13, %c0_14] : memref<3x256xf32, #tpu.memory_space<vmem>>, vector<3x256xf32>
    tpu.vector_store %arg8[%c0_13, %c0_14], %153 {strides = array<i32>} : memref<3x256xf32, #tpu.memory_space<vmem>>, vector<3x256xf32>,
    return
  }
  func.func @transform_0(%arg0: i32) -> (i32, i32) {
    %c0_i32 = arith.constant 0 : i32
    %c0_i32_0 = arith.constant 0 : i32
    return %c0_i32, %arg0 : i32, i32
  }
  func.func @transform_1(%arg0: i32) -> (i32, i32) {
    %c0_i32 = arith.constant 0 : i32
    %c0_i32_0 = arith.constant 0 : i32
    %c0_i32_1 = arith.constant 0 : i32
    return %c0_i32, %c0_i32_0 : i32, i32
  }
  func.func @transform_2(%arg0: i32) -> (i32, i32) {
    %c0_i32 = arith.constant 0 : i32
    %c0_i32_0 = arith.constant 0 : i32
    %c0_i32_1 = arith.constant 0 : i32
    return %c0_i32, %c0_i32_0 : i32, i32
  }
  func.func @transform_3(%arg0: i32) -> (i32, i32) {
    %c0_i32 = arith.constant 0 : i32
    %c0_i32_0 = arith.constant 0 : i32
    %c0_i32_1 = arith.constant 0 : i32
    return %c0_i32, %c0_i32_0 : i32, i32
  }
  func.func @transform_4(%arg0: i32) -> (i32, i32) {
    %c0_i32 = arith.constant 0 : i32
    %c0_i32_0 = arith.constant 0 : i32
    %c0_i32_1 = arith.constant 0 : i32
    return %c0_i32, %c0_i32_0 : i32, i32
  }
  func.func @transform_5(%arg0: i32) -> (i32, i32) {
    %c0_i32 = arith.constant 0 : i32
    %c0_i32_0 = arith.constant 0 : i32
    %c0_i32_1 = arith.constant 0 : i32
    return %c0_i32, %c0_i32_0 : i32, i32
  }
  func.func @transform_6(%arg0: i32) -> (i32, i32) {
    %c0_i32 = arith.constant 0 : i32
    %c0_i32_0 = arith.constant 0 : i32
    %c0_i32_1 = arith.constant 0 : i32
    return %c0_i32, %c0_i32_0 : i32, i32
  }
  func.func @transform_7(%arg0: i32) -> (i32, i32) {
    %c0_i32 = arith.constant 0 : i32
    %c0_i32_0 = arith.constant 0 : i32
    return %c0_i32, %arg0 : i32, i32
  }
}

</mosaic_0001>

<llo_original>
// kernel: tpu_custom_call.1
$region0: #{tpu_custom_call.1}
  #allocation0 [shape = 'u32[]', space=smem, size = 0x4, offset = 0x4, fixed_abs, tag = 'smem constant byte address 0x4 - core index']
  #allocation1 [shape = 'u32[144,128]{1,0:T(1,128)}', space=vmem, size = 0x12000, scoped, tag = 'internal scratch']
  %s0 = inlined_call_operand.vmem [shape: f32[3,1024], index: 0, kind: input, shape index: {}]
  %s1 = inlined_call_operand.vmem [shape: f32[10,3], index: 1, kind: input, shape index: {}]
  %s2 = inlined_call_operand.vmem [shape: f32[10,1], index: 2, kind: input, shape index: {}]
  %s3 = inlined_call_operand.vmem [shape: f32[10,10], index: 3, kind: input, shape index: {}]
  %s4 = inlined_call_operand.vmem [shape: f32[10,1], index: 4, kind: input, shape index: {}]
  %s5 = inlined_call_operand.vmem [shape: f32[3,10], index: 5, kind: input, shape index: {}]
  %s6 = inlined_call_operand.vmem [shape: f32[3,1], index: 6, kind: input, shape index: {}]
  %s7 = inlined_call_operand.hbm [shape: f32[3,1024], index: 7, kind: output, shape index: {}]
  %s8 = sld [smem:[#allocation0]]
  $region61: #{tpu_custom_call.1} parent=0
    _
  %s10 = ssub.s32 1, %s8
  %s11 = scalar_select 0, %s10, %s8
  $region1: #{tpu_custom_call.1} parent=0
    #allocation2 [shape = 'u8[8192]{0}', space=vmem, size = 0x2000, scoped, tag = 'output window, operand 0']
    #allocation3 [shape = 's32[2]{0}', space=sflag, size = 0x8, scoped, tag = 'scoped memory for tpu_custom_call.1']
    %12 = vsyncpa [#allocation3], 0
    %s13 = scalar_lea.sflag [#allocation3], 1
    %14 = vsyncpa %s13, 0
    loop: start=0, step=1, limit=6
    $region2: #{tpu_custom_call.1} parent=1 // loop_pre_header
      _
    $region3: #{tpu_custom_call.1} parent=1 // loop_header
      %s16 = sphi 0, %s20
      %p17 = scmp.ge.s32.totalorder %s16, 6
      %s26 = sphi 0, %s28
      %s29 = sphi 0, %s26
      %s30 = sphi 0, %s29
      %s46 = sphi 0, %s30
      %s50 = sphi 0, %s50
      %s52 = sphi 0, %s50
      %s53 = sphi 0, %s52
      %s67 = sphi 0, %s53
      %s71 = sphi 0, %s71
      %s73 = sphi 0, %s71
      %s74 = sphi 0, %s73
      %s88 = sphi 0, %s74
      %s92 = sphi 0, %s92
      %s94 = sphi 0, %s92
      %s95 = sphi 0, %s94
      %s109 = sphi 0, %s95
      %s113 = sphi 0, %s113
      %s115 = sphi 0, %s113
      %s116 = sphi 0, %s115
      %s130 = sphi 0, %s116
      %s134 = sphi 0, %s134
      %s136 = sphi 0, %s134
      %s137 = sphi 0, %s136
      %s151 = sphi 0, %s137
      %s155 = sphi 0, %s155
      %s157 = sphi 0, %s155
      %s158 = sphi 0, %s157
      %s172 = sphi 0, %s158
      %s178 = sphi 0, %s180
      %s181 = sphi 0, %s178
      %s182 = sphi 0, %s181
      %s198 = sphi 0, %s182
    $region4: #{tpu_custom_call.1} parent=1 // loop_header_branch
      %19 = sbr.rel (%p17) target = $region8
    $region5: #{tpu_custom_call.1} parent=1 // loop_body
      %s21 = ssub.s32 %s16, 1
      %s22 = ssub.s32 %s16, 2
      %s23 = sadd.s32 %s16, 1
      %s24 = ssub.s32 %s16, %s23
      %p25 = scmp.eq.s32.totalorder %s24, 0
      %s27 = sadd.s32 %s26, 1
      %s28 = scalar_select %p25, %s26, %s27
      %p31 = pneg %p25
      %p32 = scmp.eq.s32.totalorder %s16, 3
      %p33 = por %p31, %p32
      %p34 = scmp.ne.s32.totalorder %s26, %s29
      %p35 = scmp.eq.s32.totalorder %s16, 0
      %p36 = por %p34, %p35
      %p37 = scmp.ne.s32.totalorder %s26, %s29
      %p38 = scmp.eq.s32.totalorder %s21, 3
      %p39 = por %p37, %p38
      %p40 = scmp.ne.s32.totalorder %s29, %s30
      %p41 = scmp.eq.s32.totalorder %s21, 0
      %p42 = por %p40, %p41
      %p43 = scmp.ne.s32.totalorder %s29, %s30
      %p44 = scmp.eq.s32.totalorder %s22, 3
      %p45 = por %p43, %p44
      %p47 = scmp.ne.s32.totalorder %s30, %s46
      %p48 = scmp.eq.s32.totalorder %s22, 0
      %p49 = por %p47, %p48
      %s51 = sadd.s32 %s50, 1
      %p54 = scmp.eq.s32.totalorder %s16, 3
      %p55 = scmp.ne.s32.totalorder %s50, %s52
      %p56 = scmp.eq.s32.totalorder %s16, 0
      %p57 = por %p55, %p56
      %p58 = scmp.ne.s32.totalorder %s50, %s52
      %p59 = scmp.eq.s32.totalorder %s21, 3
      %p60 = por %p58, %p59
      %p61 = scmp.ne.s32.totalorder %s52, %s53
      %p62 = scmp.eq.s32.totalorder %s21, 0
      %p63 = por %p61, %p62
      %p64 = scmp.ne.s32.totalorder %s52, %s53
      %p65 = scmp.eq.s32.totalorder %s22, 3
      %p66 = por %p64, %p65
      %p68 = scmp.ne.s32.totalorder %s53, %s67
      %p69 = scmp.eq.s32.totalorder %s22, 0
      %p70 = por %p68, %p69
      %s72 = sadd.s32 %s71, 1
      %p75 = scmp.eq.s32.totalorder %s16, 3
      %p76 = scmp.ne.s32.totalorder %s71, %s73
      %p77 = scmp.eq.s32.totalorder %s16, 0
      %p78 = por %p76, %p77
      %p79 = scmp.ne.s32.totalorder %s71, %s73
      %p80 = scmp.eq.s32.totalorder %s21, 3
      %p81 = por %p79, %p80
      %p82 = scmp.ne.s32.totalorder %s73, %s74
      %p83 = scmp.eq.s32.totalorder %s21, 0
      %p84 = por %p82, %p83
      %p85 = scmp.ne.s32.totalorder %s73, %s74
      %p86 = scmp.eq.s32.totalorder %s22, 3
      %p87 = por %p85, %p86
      %p89 = scmp.ne.s32.totalorder %s74, %s88
      %p90 = scmp.eq.s32.totalorder %s22, 0
      %p91 = por %p89, %p90
      %s93 = sadd.s32 %s92, 1
      %p96 = scmp.eq.s32.totalorder %s16, 3
      %p97 = scmp.ne.s32.totalorder %s92, %s94
      %p98 = scmp.eq.s32.totalorder %s16, 0
      %p99 = por %p97, %p98
      %p100 = scmp.ne.s32.totalorder %s92, %s94
      %p101 = scmp.eq.s32.totalorder %s21, 3
      %p102 = por %p100, %p101
      %p103 = scmp.ne.s32.totalorder %s94, %s95
      %p104 = scmp.eq.s32.totalorder %s21, 0
      %p105 = por %p103, %p104
      %p106 = scmp.ne.s32.totalorder %s94, %s95
      %p107 = scmp.eq.s32.totalorder %s22, 3
      %p108 = por %p106, %p107
      %p110 = scmp.ne.s32.totalorder %s95, %s109
      %p111 = scmp.eq.s32.totalorder %s22, 0
      %p112 = por %p110, %p111
      %s114 = sadd.s32 %s113, 1
      %p117 = scmp.eq.s32.totalorder %s16, 3
      %p118 = scmp.ne.s32.totalorder %s113, %s115
      %p119 = scmp.eq.s32.totalorder %s16, 0
      %p120 = por %p118, %p119
      %p121 = scmp.ne.s32.totalorder %s113, %s115
      %p122 = scmp.eq.s32.totalorder %s21, 3
      %p123 = por %p121, %p122
      %p124 = scmp.ne.s32.totalorder %s115, %s116
      %p125 = scmp.eq.s32.totalorder %s21, 0
      %p126 = por %p124, %p125
      %p127 = scmp.ne.s32.totalorder %s115, %s116
      %p128 = scmp.eq.s32.totalorder %s22, 3
      %p129 = por %p127, %p128
      %p131 = scmp.ne.s32.totalorder %s116, %s130
      %p132 = scmp.eq.s32.totalorder %s22, 0
      %p133 = por %p131, %p132
      %s135 = sadd.s32 %s134, 1
      %p138 = scmp.eq.s32.totalorder %s16, 3
      %p139 = scmp.ne.s32.totalorder %s134, %s136
      %p140 = scmp.eq.s32.totalorder %s16, 0
      %p141 = por %p139, %p140
      %p142 = scmp.ne.s32.totalorder %s134, %s136
      %p143 = scmp.eq.s32.totalorder %s21, 3
      %p144 = por %p142, %p143
      %p145 = scmp.ne.s32.totalorder %s136, %s137
      %p146 = scmp.eq.s32.totalorder %s21, 0
      %p147 = por %p145, %p146
      %p148 = scmp.ne.s32.totalorder %s136, %s137
      %p149 = scmp.eq.s32.totalorder %s22, 3
      %p150 = por %p148, %p149
      %p152 = scmp.ne.s32.totalorder %s137, %s151
      %p153 = scmp.eq.s32.totalorder %s22, 0
      %p154 = por %p152, %p153
      %s156 = sadd.s32 %s155, 1
      %p159 = scmp.eq.s32.totalorder %s16, 3
      %p160 = scmp.ne.s32.totalorder %s155, %s157
      %p161 = scmp.eq.s32.totalorder %s16, 0
      %p162 = por %p160, %p161
      %p163 = scmp.ne.s32.totalorder %s155, %s157
      %p164 = scmp.eq.s32.totalorder %s21, 3
      %p165 = por %p163, %p164
      %p166 = scmp.ne.s32.totalorder %s157, %s158
      %p167 = scmp.eq.s32.totalorder %s21, 0
      %p168 = por %p166, %p167
      %p169 = scmp.ne.s32.totalorder %s157, %s158
      %p170 = scmp.eq.s32.totalorder %s22, 3
      %p171 = por %p169, %p170
      %p173 = scmp.ne.s32.totalorder %s158, %s172
      %p174 = scmp.eq.s32.totalorder %s22, 0
      %p175 = por %p173, %p174
      %s176 = ssub.s32 %s16, %s23
      %p177 = scmp.eq.s32.totalorder %s176, 0
      %s179 = sadd.s32 %s178, 1
      %s180 = scalar_select %p177, %s178, %s179
      %p183 = pneg %p177
      %p184 = scmp.eq.s32.totalorder %s16, 3
      %p185 = por %p183, %p184
      %p186 = scmp.ne.s32.totalorder %s178, %s181
      %p187 = scmp.eq.s32.totalorder %s16, 0
      %p188 = por %p186, %p187
      %p189 = scmp.ne.s32.totalorder %s178, %s181
      %p190 = scmp.eq.s32.totalorder %s21, 3
      %p191 = por %p189, %p190
      %p192 = scmp.ne.s32.totalorder %s181, %s182
      %p193 = scmp.eq.s32.totalorder %s21, 0
      %p194 = por %p192, %p193
      %p195 = scmp.ne.s32.totalorder %s181, %s182
      %p196 = scmp.eq.s32.totalorder %s22, 3
      %p197 = por %p195, %p196
      %p199 = scmp.ne.s32.totalorder %s182, %s198
      %p200 = scmp.eq.s32.totalorder %s22, 0
      %p201 = por %p199, %p200
      %p202 = scmp.le.s32.totalorder 1, %s16
      %p203 = scmp.lt.s32.totalorder %s16, 5
      %p204 = pnand %p202, %p203
      %p205 = pneg %p204
      // Predicated region
      $region9: #{tpu_custom_call.1} parent=5 // pred_check
        _
      $region10: #{tpu_custom_call.1} parent=5 // pred_check_branch
        %207 = sbr.rel (%p204) target = $region12
      $region11: #{tpu_custom_call.1} parent=5 // pred_region
        %s208 = ssub.s32 %s16, 1
        // Predicated region
        $region13: #{tpu_custom_call.1} parent=11 // pred_check
          %p209 = pneg %p63
        $region14: #{tpu_custom_call.1} parent=11 // pred_check_branch
          %211 = sbr.rel (%p209) target = $region16
        $region15: #{tpu_custom_call.1} parent=11 // pred_region
          _
        $region16: #{tpu_custom_call.1} parent=11 // pred_fallthru
          _
        // Predicated region
        $region17: #{tpu_custom_call.1} parent=11 // pred_check
          %p212 = pneg %p84
        $region18: #{tpu_custom_call.1} parent=11 // pred_check_branch
          %214 = sbr.rel (%p212) target = $region20
        $region19: #{tpu_custom_call.1} parent=11 // pred_region
          _
        $region20: #{tpu_custom_call.1} parent=11 // pred_fallthru
          _
        // Predicated region
        $region21: #{tpu_custom_call.1} parent=11 // pred_check
          %p215 = pneg %p105
        $region22: #{tpu_custom_call.1} parent=11 // pred_check_branch
          %217 = sbr.rel (%p215) target = $region24
        $region23: #{tpu_custom_call.1} parent=11 // pred_region
          _
        $region24: #{tpu_custom_call.1} parent=11 // pred_fallthru
          _
        // Predicated region
        $region25: #{tpu_custom_call.1} parent=11 // pred_check
          %p218 = pneg %p126
        $region26: #{tpu_custom_call.1} parent=11 // pred_check_branch
          %220 = sbr.rel (%p218) target = $region28
        $region27: #{tpu_custom_call.1} parent=11 // pred_region
          _
        $region28: #{tpu_custom_call.1} parent=11 // pred_fallthru
          _
        // Predicated region
        $region29: #{tpu_custom_call.1} parent=11 // pred_check
          %p221 = pneg %p147
        $region30: #{tpu_custom_call.1} parent=11 // pred_check_branch
          %223 = sbr.rel (%p221) target = $region32
        $region31: #{tpu_custom_call.1} parent=11 // pred_region
          _
        $region32: #{tpu_custom_call.1} parent=11 // pred_fallthru
          _
        // Predicated region
        $region33: #{tpu_custom_call.1} parent=11 // pred_check
          %p224 = pneg %p168
        $region34: #{tpu_custom_call.1} parent=11 // pred_check_branch
          %226 = sbr.rel (%p224) target = $region36
        $region35: #{tpu_custom_call.1} parent=11 // pred_region
          _
        $region36: #{tpu_custom_call.1} parent=11 // pred_fallthru
          _
      $region12: #{tpu_custom_call.1} parent=5 // pred_fallthru
        _
      %p227 = scmp.lt.s32.totalorder %s16, 4
      // Predicated region
      $region37: #{tpu_custom_call.1} parent=5 // pred_check
        %p228 = pneg %p227
      $region38: #{tpu_custom_call.1} parent=5 // pred_check_branch
        %230 = sbr.rel (%p228) target = $region40
      $region39: #{tpu_custom_call.1} parent=5 // pred_region
        // Predicated region
        $region41: #{tpu_custom_call.1} parent=39 // pred_check
          %p231 = pneg %p36
        $region42: #{tpu_custom_call.1} parent=39 // pred_check_branch
          %233 = sbr.rel (%p231) target = $region44
        $region43: #{tpu_custom_call.1} parent=39 // pred_region
          %s234 = smul.u32 2, %s16
          %p235 = scmp.lt.s32.totalorder %s234, 7
          %s236 = scalar_select %p235, %s234, 7
          %s237 = smul.addr %s236, 4
          %s238 = scalar_lea.vmem %s0, %s237
          %s239 = smul.u32 2, %s16
        $region44: #{tpu_custom_call.1} parent=39 // pred_fallthru
          _
      $region40: #{tpu_custom_call.1} parent=5 // pred_fallthru
        _
      %p240 = scmp.le.s32.totalorder 1, %s16
      %p241 = scmp.lt.s32.totalorder %s16, 5
      %p242 = pnand %p240, %p241
      %p243 = pneg %p242
      // Predicated region
      $region45: #{tpu_custom_call.1} parent=5 // pred_check
        _
      $region46: #{tpu_custom_call.1} parent=5 // pred_check_branch
        %245 = sbr.rel (%p242) target = $region48
      $region47: #{tpu_custom_call.1} parent=5 // pred_region
        %s246 = ssub.s32 %s16, 1
        %s247 = smul.u32 2, %s21
        %p248 = scmp.lt.s32.totalorder %s247, 7
        %s249 = scalar_select %p248, %s247, 7
        %s250 = smul.addr %s249, 4
        %s251 = scalar_lea.vmem %s0, %s250
        %p252 = pneg %p42
        %p253 = pneg %p39
        %p254 = pneg %p63
        %p255 = pneg %p60
        %p256 = pneg %p84
        %p257 = pneg %p81
        %p258 = pneg %p105
        %p259 = pneg %p102
        %p260 = pneg %p126
        %p261 = pneg %p123
        %p262 = pneg %p147
        %p263 = pneg %p144
        %p264 = pneg %p168
        %p265 = pneg %p165
        %p266 = pneg %p194
        %p267 = pneg %p191
        %s268 = sand.u32 %s181, 1
        %s269 = scalar_lea.sflag [#allocation3], %s268
        %s270 = sand.u32 %s181, 1
        %s271 = smul.addr %s270, 8
        %s272 = scalar_lea.vmem [#allocation2], %s271
        %s273 = smul.u32 2, %s21
        %p274 = scmp.lt.s32.totalorder %s273, 7
        %s275 = scalar_select %p274, %s273, 7
        %s276 = smul.addr %s275, 4
        %s277 = scalar_lea.vmem %s0, %s276
        %s278 = smul.u32 2, %s21
        %s279 = smul.u32 2, %s21
        %v280 = vld [vmem:[%s277] sm:$0x77]
        %v281 = vld [vmem:[%s1] sm:$0xff]
        %v282 = vld [vmem:[%s1 + $0x8] sm:$0x3]
        %v283 = vld [vmem:[%s2] sm:$0xff]
        %v284 = vld [vmem:[%s2 + $0x8] sm:$0x3]
        %286 = vset.pattern.permute.xlu0 0
        %287 = vperm.xlu0 %286, %v283
        %v288 = vpop.permute.xlu0 %287
        %291 = vset.pattern.permute.xlu0 0
        %292 = vperm.xlu0 %291, %v284
        %v293 = vpop.permute.xlu0 %292
        %296 = vset.pattern.permute.xlu0 0
        %297 = vperm.xlu0 %296, %v281
        %v298 = vpop.permute.xlu0 %297
        %301 = vset.pattern.permute.xlu0 0
        %302 = vperm.xlu0 %301, %v282
        %v303 = vpop.permute.xlu0 %302
        %v306 = vlaneseq
        %v307 = vshrl.u32 %v306, 7
        %v308 = vsub.s32 0, %v307
        %v309 = vrot.slane %v280, %v308
        %v310 = vlaneseq
        %v311 = vshrl.u32 %v310, 7
        %v312 = vsub.s32 4, %v311
        %v313 = vrot.slane %v280, %v312
        %v316 = vlaneseq
        %v317 = vshrl.u32 %v316, 7
        %v318 = vsub.s32 0, %v317
        %v319 = vrot.slane %v309, %v318
        %v320 = vlaneseq
        %v321 = vshrl.u32 %v320, 7
        %v322 = vsub.s32 0, %v321
        %v323 = vrot.slane %v313, %v322
        %v324 = vmul.f32 %v298, %v319
        %v325 = vmul.f32 %v298, %v323
        %v326 = vmul.f32 %v303, %v319
        %v327 = vmul.f32 %v303, %v323
        %v328 = vadd.f32 %v288, %v324
        %v329 = vadd.f32 %v288, %v325
        %v330 = vadd.f32 %v293, %v326
        %v331 = vadd.f32 %v293, %v327
        %332 = vset.pattern.permute.xlu0 1
        %333 = vperm.xlu0 %332, %v281
        %v334 = vpop.permute.xlu0 %333
        %336 = vset.pattern.permute.xlu0 1
        %337 = vperm.xlu0 %336, %v282
        %v338 = vpop.permute.xlu0 %337
        %v340 = vlaneseq
        %v341 = vshrl.u32 %v340, 7
        %v342 = vsub.s32 1, %v341
        %v343 = vrot.slane %v280, %v342
        %v344 = vlaneseq
        %v345 = vshrl.u32 %v344, 7
        %v346 = vsub.s32 5, %v345
        %v347 = vrot.slane %v280, %v346
        %v350 = vlaneseq
        %v351 = vshrl.u32 %v350, 7
        %v352 = vsub.s32 1, %v351
        %v353 = vrot.slane %v343, %v352
        %v354 = vlaneseq
        %v355 = vshrl.u32 %v354, 7
        %v356 = vsub.s32 1, %v355
        %v357 = vrot.slane %v347, %v356
        %v358 = vmul.f32 %v334, %v353
        %v359 = vmul.f32 %v334, %v357
        %v360 = vmul.f32 %v338, %v353
        %v361 = vmul.f32 %v338, %v357
        %v362 = vadd.f32 %v328, %v358
        %v363 = vadd.f32 %v329, %v359
        %v364 = vadd.f32 %v330, %v360
        %v365 = vadd.f32 %v331, %v361
        %366 = vset.pattern.permute.xlu0 2
        %367 = vperm.xlu0 %366, %v281
        %v368 = vpop.permute.xlu0 %367
        %370 = vset.pattern.permute.xlu0 2
        %371 = vperm.xlu0 %370, %v282
        %v372 = vpop.permute.xlu0 %371
        %v374 = vlaneseq
        %v375 = vshrl.u32 %v374, 7
        %v376 = vsub.s32 2, %v375
        %v377 = vrot.slane %v280, %v376
        %v378 = vlaneseq
        %v379 = vshrl.u32 %v378, 7
        %v380 = vsub.s32 6, %v379
        %v381 = vrot.slane %v280, %v380
        %v384 = vlaneseq
        %v385 = vshrl.u32 %v384, 7
        %v386 = vsub.s32 2, %v385
        %v387 = vrot.slane %v377, %v386
        %v388 = vlaneseq
        %v389 = vshrl.u32 %v388, 7
        %v390 = vsub.s32 2, %v389
        %v391 = vrot.slane %v381, %v390
        %v392 = vmul.f32 %v368, %v387
        %v393 = vmul.f32 %v368, %v391
        %v394 = vmul.f32 %v372, %v387
        %v395 = vmul.f32 %v372, %v391
        %v396 = vadd.f32 %v362, %v392
        %v397 = vadd.f32 %v363, %v393
        %v398 = vadd.f32 %v364, %v394
        %v399 = vadd.f32 %v365, %v395
        %v400 = vtanh.pop %v396
        %v401 = vtanh.pop %v397
        %v402 = vtanh.pop %v398
        %v403 = vtanh.pop %v399
        %v404 = vld [vmem:[%s3] sm:$0xff]
        %v405 = vld [vmem:[%s3 + $0x8] sm:$0x3]
        %v406 = vld [vmem:[%s4] sm:$0xff]
        %v407 = vld [vmem:[%s4 + $0x8] sm:$0x3]
        %409 = vset.pattern.permute.xlu0 0
        %410 = vperm.xlu0 %409, %v406
        %v411 = vpop.permute.xlu0 %410
        %414 = vset.pattern.permute.xlu0 0
        %415 = vperm.xlu0 %414, %v407
        %v416 = vpop.permute.xlu0 %415
        %419 = vset.pattern.permute.xlu0 0
        %420 = vperm.xlu0 %419, %v404
        %v421 = vpop.permute.xlu0 %420
        %424 = vset.pattern.permute.xlu0 0
        %425 = vperm.xlu0 %424, %v405
        %v426 = vpop.permute.xlu0 %425
        %v428 = vlaneseq
        %v429 = vshrl.u32 %v428, 7
        %v430 = vsub.s32 0, %v429
        %v431 = vrot.slane %v400, %v430
        %v432 = vlaneseq
        %v433 = vshrl.u32 %v432, 7
        %v434 = vsub.s32 0, %v433
        %v435 = vrot.slane %v401, %v434
        %v436 = vmul.f32 %v421, %v431
        %v437 = vmul.f32 %v421, %v435
        %v438 = vmul.f32 %v426, %v431
        %v439 = vmul.f32 %v426, %v435
        %v440 = vadd.f32 %v411, %v436
        %v441 = vadd.f32 %v411, %v437
        %v442 = vadd.f32 %v416, %v438
        %v443 = vadd.f32 %v416, %v439
        %444 = vset.pattern.permute.xlu0 1
        %445 = vperm.xlu0 %444, %v404
        %v446 = vpop.permute.xlu0 %445
        %448 = vset.pattern.permute.xlu0 1
        %449 = vperm.xlu0 %448, %v405
        %v450 = vpop.permute.xlu0 %449
        %v452 = vlaneseq
        %v453 = vshrl.u32 %v452, 7
        %v454 = vsub.s32 1, %v453
        %v455 = vrot.slane %v400, %v454
        %v456 = vlaneseq
        %v457 = vshrl.u32 %v456, 7
        %v458 = vsub.s32 1, %v457
        %v459 = vrot.slane %v401, %v458
        %v460 = vmul.f32 %v446, %v455
        %v461 = vmul.f32 %v446, %v459
        %v462 = vmul.f32 %v450, %v455
        %v463 = vmul.f32 %v450, %v459
        %v464 = vadd.f32 %v440, %v460
        %v465 = vadd.f32 %v441, %v461
        %v466 = vadd.f32 %v442, %v462
        %v467 = vadd.f32 %v443, %v463
        %468 = vset.pattern.permute.xlu0 2
        %469 = vperm.xlu0 %468, %v404
        %v470 = vpop.permute.xlu0 %469
        %472 = vset.pattern.permute.xlu0 2
        %473 = vperm.xlu0 %472, %v405
        %v474 = vpop.permute.xlu0 %473
        %v476 = vlaneseq
        %v477 = vshrl.u32 %v476, 7
        %v478 = vsub.s32 2, %v477
        %v479 = vrot.slane %v400, %v478
        %v480 = vlaneseq
        %v481 = vshrl.u32 %v480, 7
        %v482 = vsub.s32 2, %v481
        %v483 = vrot.slane %v401, %v482
        %v484 = vmul.f32 %v470, %v479
        %v485 = vmul.f32 %v470, %v483
        %v486 = vmul.f32 %v474, %v479
        %v487 = vmul.f32 %v474, %v483
        %v488 = vadd.f32 %v464, %v484
        %v489 = vadd.f32 %v465, %v485
        %v490 = vadd.f32 %v466, %v486
        %v491 = vadd.f32 %v467, %v487
        %492 = vset.pattern.permute.xlu0 3
        %493 = vperm.xlu0 %492, %v404
        %v494 = vpop.permute.xlu0 %493
        %496 = vset.pattern.permute.xlu0 3
        %497 = vperm.xlu0 %496, %v405
        %v498 = vpop.permute.xlu0 %497
        %v500 = vlaneseq
        %v501 = vshrl.u32 %v500, 7
        %v502 = vsub.s32 3, %v501
        %v503 = vrot.slane %v400, %v502
        %v504 = vlaneseq
        %v505 = vshrl.u32 %v504, 7
        %v506 = vsub.s32 3, %v505
        %v507 = vrot.slane %v401, %v506
        %v508 = vmul.f32 %v494, %v503
        %v509 = vmul.f32 %v494, %v507
        %v510 = vmul.f32 %v498, %v503
        %v511 = vmul.f32 %v498, %v507
        %v512 = vadd.f32 %v488, %v508
        %v513 = vadd.f32 %v489, %v509
        %v514 = vadd.f32 %v490, %v510
        %v515 = vadd.f32 %v491, %v511
        %516 = vset.pattern.permute.xlu0 4
        %517 = vperm.xlu0 %516, %v404
        %v518 = vpop.permute.xlu0 %517
        %520 = vset.pattern.permute.xlu0 4
        %521 = vperm.xlu0 %520, %v405
        %v522 = vpop.permute.xlu0 %521
        %v524 = vlaneseq
        %v525 = vshrl.u32 %v524, 7
        %v526 = vsub.s32 4, %v525
        %v527 = vrot.slane %v400, %v526
        %v528 = vlaneseq
        %v529 = vshrl.u32 %v528, 7
        %v530 = vsub.s32 4, %v529
        %v531 = vrot.slane %v401, %v530
        %v532 = vmul.f32 %v518, %v527
        %v533 = vmul.f32 %v518, %v531
        %v534 = vmul.f32 %v522, %v527
        %v535 = vmul.f32 %v522, %v531
        %v536 = vadd.f32 %v512, %v532
        %v537 = vadd.f32 %v513, %v533
        %v538 = vadd.f32 %v514, %v534
        %v539 = vadd.f32 %v515, %v535
        %540 = vset.pattern.permute.xlu0 5
        %541 = vperm.xlu0 %540, %v404
        %v542 = vpop.permute.xlu0 %541
        %544 = vset.pattern.permute.xlu0 5
        %545 = vperm.xlu0 %544, %v405
        %v546 = vpop.permute.xlu0 %545
        %v548 = vlaneseq
        %v549 = vshrl.u32 %v548, 7
        %v550 = vsub.s32 5, %v549
        %v551 = vrot.slane %v400, %v550
        %v552 = vlaneseq
        %v553 = vshrl.u32 %v552, 7
        %v554 = vsub.s32 5, %v553
        %v555 = vrot.slane %v401, %v554
        %v556 = vmul.f32 %v542, %v551
        %v557 = vmul.f32 %v542, %v555
        %v558 = vmul.f32 %v546, %v551
        %v559 = vmul.f32 %v546, %v555
        %v560 = vadd.f32 %v536, %v556
        %v561 = vadd.f32 %v537, %v557
        %v562 = vadd.f32 %v538, %v558
        %v563 = vadd.f32 %v539, %v559
        %564 = vset.pattern.permute.xlu0 6
        %565 = vperm.xlu0 %564, %v404
        %v566 = vpop.permute.xlu0 %565
        %568 = vset.pattern.permute.xlu0 6
        %569 = vperm.xlu0 %568, %v405
        %v570 = vpop.permute.xlu0 %569
        %v572 = vlaneseq
        %v573 = vshrl.u32 %v572, 7
        %v574 = vsub.s32 6, %v573
        %v575 = vrot.slane %v400, %v574
        %v576 = vlaneseq
        %v577 = vshrl.u32 %v576, 7
        %v578 = vsub.s32 6, %v577
        %v579 = vrot.slane %v401, %v578
        %v580 = vmul.f32 %v566, %v575
        %v581 = vmul.f32 %v566, %v579
        %v582 = vmul.f32 %v570, %v575
        %v583 = vmul.f32 %v570, %v579
        %v584 = vadd.f32 %v560, %v580
        %v585 = vadd.f32 %v561, %v581
        %v586 = vadd.f32 %v562, %v582
        %v587 = vadd.f32 %v563, %v583
        %588 = vset.pattern.permute.xlu0 7
        %589 = vperm.xlu0 %588, %v404
        %v590 = vpop.permute.xlu0 %589
        %592 = vset.pattern.permute.xlu0 7
        %593 = vperm.xlu0 %592, %v405
        %v594 = vpop.permute.xlu0 %593
        %v596 = vlaneseq
        %v597 = vshrl.u32 %v596, 7
        %v598 = vsub.s32 7, %v597
        %v599 = vrot.slane %v400, %v598
        %v600 = vlaneseq
        %v601 = vshrl.u32 %v600, 7
        %v602 = vsub.s32 7, %v601
        %v603 = vrot.slane %v401, %v602
        %v604 = vmul.f32 %v590, %v599
        %v605 = vmul.f32 %v590, %v603
        %v606 = vmul.f32 %v594, %v599
        %v607 = vmul.f32 %v594, %v603
        %v608 = vadd.f32 %v584, %v604
        %v609 = vadd.f32 %v585, %v605
        %v610 = vadd.f32 %v586, %v606
        %v611 = vadd.f32 %v587, %v607
        %612 = vset.pattern.permute.xlu0 8
        %613 = vperm.xlu0 %612, %v404
        %v614 = vpop.permute.xlu0 %613
        %616 = vset.pattern.permute.xlu0 8
        %617 = vperm.xlu0 %616, %v405
        %v618 = vpop.permute.xlu0 %617
        %v620 = vlaneseq
        %v621 = vshrl.u32 %v620, 7
        %v622 = vsub.s32 0, %v621
        %v623 = vrot.slane %v402, %v622
        %v624 = vlaneseq
        %v625 = vshrl.u32 %v624, 7
        %v626 = vsub.s32 0, %v625
        %v627 = vrot.slane %v403, %v626
        %v628 = vmul.f32 %v614, %v623
        %v629 = vmul.f32 %v614, %v627
        %v630 = vmul.f32 %v618, %v623
        %v631 = vmul.f32 %v618, %v627
        %v632 = vadd.f32 %v608, %v628
        %v633 = vadd.f32 %v609, %v629
        %v634 = vadd.f32 %v610, %v630
        %v635 = vadd.f32 %v611, %v631
        %636 = vset.pattern.permute.xlu0 9
        %637 = vperm.xlu0 %636, %v404
        %v638 = vpop.permute.xlu0 %637
        %640 = vset.pattern.permute.xlu0 9
        %641 = vperm.xlu0 %640, %v405
        %v642 = vpop.permute.xlu0 %641
        %v644 = vlaneseq
        %v645 = vshrl.u32 %v644, 7
        %v646 = vsub.s32 1, %v645
        %v647 = vrot.slane %v402, %v646
        %v648 = vlaneseq
        %v649 = vshrl.u32 %v648, 7
        %v650 = vsub.s32 1, %v649
        %v651 = vrot.slane %v403, %v650
        %v652 = vmul.f32 %v638, %v647
        %v653 = vmul.f32 %v638, %v651
        %v654 = vmul.f32 %v642, %v647
        %v655 = vmul.f32 %v642, %v651
        %v656 = vadd.f32 %v632, %v652
        %v657 = vadd.f32 %v633, %v653
        %v658 = vadd.f32 %v634, %v654
        %v659 = vadd.f32 %v635, %v655
        %v660 = vtanh.pop %v656
        %v661 = vtanh.pop %v657
        %v662 = vtanh.pop %v658
        %v663 = vtanh.pop %v659
        %v664 = vld [vmem:[%s5] sm:$0x7]
        %v665 = vld [vmem:[%s6] sm:$0x7]
        %667 = vset.pattern.permute.xlu0 0
        %668 = vperm.xlu0 %667, %v665
        %v669 = vpop.permute.xlu0 %668
        %672 = vset.pattern.permute.xlu0 0
        %673 = vperm.xlu0 %672, %v664
        %v674 = vpop.permute.xlu0 %673
        %v676 = vlaneseq
        %v677 = vshrl.u32 %v676, 7
        %v678 = vsub.s32 0, %v677
        %v679 = vrot.slane %v660, %v678
        %v680 = vlaneseq
        %v681 = vshrl.u32 %v680, 7
        %v682 = vsub.s32 0, %v681
        %v683 = vrot.slane %v661, %v682
        %v684 = vmul.f32 %v674, %v679
        %v685 = vmul.f32 %v674, %v683
        %v686 = vadd.f32 %v669, %v684
        %v687 = vadd.f32 %v669, %v685
        %688 = vset.pattern.permute.xlu0 1
        %689 = vperm.xlu0 %688, %v664
        %v690 = vpop.permute.xlu0 %689
        %v692 = vlaneseq
        %v693 = vshrl.u32 %v692, 7
        %v694 = vsub.s32 1, %v693
        %v695 = vrot.slane %v660, %v694
        %v696 = vlaneseq
        %v697 = vshrl.u32 %v696, 7
        %v698 = vsub.s32 1, %v697
        %v699 = vrot.slane %v661, %v698
        %v700 = vmul.f32 %v690, %v695
        %v701 = vmul.f32 %v690, %v699
        %v702 = vadd.f32 %v686, %v700
        %v703 = vadd.f32 %v687, %v701
        %704 = vset.pattern.permute.xlu0 2
        %705 = vperm.xlu0 %704, %v664
        %v706 = vpop.permute.xlu0 %705
        %v708 = vlaneseq
        %v709 = vshrl.u32 %v708, 7
        %v710 = vsub.s32 2, %v709
        %v711 = vrot.slane %v660, %v710
        %v712 = vlaneseq
        %v713 = vshrl.u32 %v712, 7
        %v714 = vsub.s32 2, %v713
        %v715 = vrot.slane %v661, %v714
        %v716 = vmul.f32 %v706, %v711
        %v717 = vmul.f32 %v706, %v715
        %v718 = vadd.f32 %v702, %v716
        %v719 = vadd.f32 %v703, %v717
        %720 = vset.pattern.permute.xlu0 3
        %721 = vperm.xlu0 %720, %v664
        %v722 = vpop.permute.xlu0 %721
        %v724 = vlaneseq
        %v725 = vshrl.u32 %v724, 7
        %v726 = vsub.s32 3, %v725
        %v727 = vrot.slane %v660, %v726
        %v728 = vlaneseq
        %v729 = vshrl.u32 %v728, 7
        %v730 = vsub.s32 3, %v729
        %v731 = vrot.slane %v661, %v730
        %v732 = vmul.f32 %v722, %v727
        %v733 = vmul.f32 %v722, %v731
        %v734 = vadd.f32 %v718, %v732
        %v735 = vadd.f32 %v719, %v733
        %736 = vset.pattern.permute.xlu0 4
        %737 = vperm.xlu0 %736, %v664
        %v738 = vpop.permute.xlu0 %737
        %v740 = vlaneseq
        %v741 = vshrl.u32 %v740, 7
        %v742 = vsub.s32 4, %v741
        %v743 = vrot.slane %v660, %v742
        %v744 = vlaneseq
        %v745 = vshrl.u32 %v744, 7
        %v746 = vsub.s32 4, %v745
        %v747 = vrot.slane %v661, %v746
        %v748 = vmul.f32 %v738, %v743
        %v749 = vmul.f32 %v738, %v747
        %v750 = vadd.f32 %v734, %v748
        %v751 = vadd.f32 %v735, %v749
        %752 = vset.pattern.permute.xlu0 5
        %753 = vperm.xlu0 %752, %v664
        %v754 = vpop.permute.xlu0 %753
        %v756 = vlaneseq
        %v757 = vshrl.u32 %v756, 7
        %v758 = vsub.s32 5, %v757
        %v759 = vrot.slane %v660, %v758
        %v760 = vlaneseq
        %v761 = vshrl.u32 %v760, 7
        %v762 = vsub.s32 5, %v761
        %v763 = vrot.slane %v661, %v762
        %v764 = vmul.f32 %v754, %v759
        %v765 = vmul.f32 %v754, %v763
        %v766 = vadd.f32 %v750, %v764
        %v767 = vadd.f32 %v751, %v765
        %768 = vset.pattern.permute.xlu0 6
        %769 = vperm.xlu0 %768, %v664
        %v770 = vpop.permute.xlu0 %769
        %v772 = vlaneseq
        %v773 = vshrl.u32 %v772, 7
        %v774 = vsub.s32 6, %v773
        %v775 = vrot.slane %v660, %v774
        %v776 = vlaneseq
        %v777 = vshrl.u32 %v776, 7
        %v778 = vsub.s32 6, %v777
        %v779 = vrot.slane %v661, %v778
        %v780 = vmul.f32 %v770, %v775
        %v781 = vmul.f32 %v770, %v779
        %v782 = vadd.f32 %v766, %v780
        %v783 = vadd.f32 %v767, %v781
        %784 = vset.pattern.permute.xlu0 7
        %785 = vperm.xlu0 %784, %v664
        %v786 = vpop.permute.xlu0 %785
        %v788 = vlaneseq
        %v789 = vshrl.u32 %v788, 7
        %v790 = vsub.s32 7, %v789
        %v791 = vrot.slane %v660, %v790
        %v792 = vlaneseq
        %v793 = vshrl.u32 %v792, 7
        %v794 = vsub.s32 7, %v793
        %v795 = vrot.slane %v661, %v794
        %v796 = vmul.f32 %v786, %v791
        %v797 = vmul.f32 %v786, %v795
        %v798 = vadd.f32 %v782, %v796
        %v799 = vadd.f32 %v783, %v797
        %800 = vset.pattern.permute.xlu0 8
        %801 = vperm.xlu0 %800, %v664
        %v802 = vpop.permute.xlu0 %801
        %v804 = vlaneseq
        %v805 = vshrl.u32 %v804, 7
        %v806 = vsub.s32 0, %v805
        %v807 = vrot.slane %v662, %v806
        %v808 = vlaneseq
        %v809 = vshrl.u32 %v808, 7
        %v810 = vsub.s32 0, %v809
        %v811 = vrot.slane %v663, %v810
        %v812 = vmul.f32 %v802, %v807
        %v813 = vmul.f32 %v802, %v811
        %v814 = vadd.f32 %v798, %v812
        %v815 = vadd.f32 %v799, %v813
        %816 = vset.pattern.permute.xlu0 9
        %817 = vperm.xlu0 %816, %v664
        %v818 = vpop.permute.xlu0 %817
        %v820 = vlaneseq
        %v821 = vshrl.u32 %v820, 7
        %v822 = vsub.s32 1, %v821
        %v823 = vrot.slane %v662, %v822
        %v824 = vlaneseq
        %v825 = vshrl.u32 %v824, 7
        %v826 = vsub.s32 1, %v825
        %v827 = vrot.slane %v663, %v826
        %v828 = vmul.f32 %v818, %v823
        %v829 = vmul.f32 %v818, %v827
        %v830 = vadd.f32 %v814, %v828
        %v831 = vadd.f32 %v815, %v829
        %v832 = vand.u32 2147483647, %v830
        %v833 = vand.u32 2147483647, %v831
        %v836 = vcombine.low %v832, %v833
        %838 = vst [vmem:[%s272] sm:$0x77] %v836
        %s839 = sand.u32 %s181, 1
        %s840 = scalar_lea.sflag [#allocation3], %s839
        %s841 = sand.u32 %s181, 1
        %s842 = smul.addr %s841, 8
        %s843 = scalar_lea.vmem [#allocation2], %s842
        // Predicated region
        $region49: #{tpu_custom_call.1} parent=47 // pred_check
          %p844 = pneg %p191
        $region50: #{tpu_custom_call.1} parent=47 // pred_check_branch
          %846 = sbr.rel (%p844) target = $region52
        $region51: #{tpu_custom_call.1} parent=47 // pred_region
          %s847 = smul.u32 2, %s21
          %s849 = ssub.s32 128, 128
          %850 = vsyncadd %s840, %s849
          %s851 = smul.addr %s847, 64
          %s852 = scalar_lea.hbm %s7, %s851
          %s854 = sshll.u32 %s843, 4
          %s855 = int_to_ptr.vmem [resolvable:$true] %s854
          %857 = dma.vmem_to_hbm [thread:$0]  %s855, 128, %s852, %s840
        $region52: #{tpu_custom_call.1} parent=47 // pred_fallthru
          _
      $region48: #{tpu_custom_call.1} parent=5 // pred_fallthru
        _
      %p858 = scmp.le.s32.totalorder 2, %s16
      // Predicated region
      $region53: #{tpu_custom_call.1} parent=5 // pred_check
        %p859 = pneg %p858
      $region54: #{tpu_custom_call.1} parent=5 // pred_check_branch
        %861 = sbr.rel (%p859) target = $region56
      $region55: #{tpu_custom_call.1} parent=5 // pred_region
        %s862 = ssub.s32 %s16, 2
        // Predicated region
        $region57: #{tpu_custom_call.1} parent=55 // pred_check
          %p863 = pneg %p197
        $region58: #{tpu_custom_call.1} parent=55 // pred_check_branch
          %865 = sbr.rel (%p863) target = $region60
        $region59: #{tpu_custom_call.1} parent=55 // pred_region
          %s866 = sand.u32 %s182, 1
          %s867 = scalar_lea.sflag [#allocation3], %s866
          %s868 = sand.u32 %s182, 1
          %s869 = smul.addr %s868, 8
          %s870 = scalar_lea.vmem [#allocation2], %s869
          %871 = dma.done %s867, 128
        $region60: #{tpu_custom_call.1} parent=55 // pred_fallthru
          _
      $region56: #{tpu_custom_call.1} parent=5 // pred_fallthru
        _
    $region6: #{tpu_custom_call.1} parent=1 // loop_footer
      %s20 = sadd.s32 1, %s16
    $region7: #{tpu_custom_call.1} parent=1 // loop_footer_branch
      %15 = sbr.rel target = $region3
    $region8: #{tpu_custom_call.1} parent=1 // loop_exit
      _
    %872 = vsyncpa [#allocation3], 1
    %s873 = scalar_lea.sflag [#allocation3], 1
    %874 = vsyncpa %s873, 1

</llo_original>
